<compile_context>
chip_gen: v6e
topology: v6e:2x2x1
jax: 0.10.0
libtpu: 0.0.40
codegen_flags: <defaults>
</compile_context>

<pallas_src>
import numpy as np

import jax
import jax.numpy as jnp
from jax.experimental import pallas as pl
from jax.experimental.pallas import tpu as pltpu


_MAX_BLOCK_BYTES = 8 * 1024 * 1024     # per output block (bool = 1 byte/elem)
_MAX_B_TILE = 2048
_VMEM_LIMIT_BYTES = 32 * 1024 * 1024   # 2 x 8 MiB double-buffered out + inputs


def _round_up(x, m):
    return -(-x // m) * m


def _choose_tiles(B, TD):
    """Pick (batch_tile, lane_tile) for the (B, T*D) bool output."""
    budget = _MAX_BLOCK_BYTES
    # Prefer a full-width lane block (unmasked vst-friendly); tile the flat
    # T*D axis (multiples of 128) only if even a 32-row block blows the budget.
    if 32 * TD <= budget:
        td_tile = TD
    else:
        td_tile = max(128, (budget // 32) // 128 * 128)
    rows = max(8, budget // td_tile)
    b_tile = min(B, rows, _MAX_B_TILE)
    if b_tile < B:
        # bool/int8 vregs pack 32 sublanes: keep stores fully packed.
        b_tile = max(8, (b_tile // 32) * 32)
    # v7x has 2 TensorCores: split a large single-block batch in two so both
    # cores get a "parallel" slice of the write stream.
    if b_tile == B and td_tile >= TD and B >= 64:
        half = _round_up(pl.cdiv(B, 2), 32)
        if half < B:
            b_tile = half
    return b_tile, td_tile


def _mask_kernel(eff_t_ref, obs_ref, out_ref):
    # eff_t_ref: (1, td_tile) int32  — per-lane threshold (t for obs dims,
    #            t+1 for action dims when action_visible, huge sentinel else)
    # obs_ref:   (b_tile, 1) int32   — per-batch-row obs_steps
    # out_ref:   (b_tile, td_tile) bool — lane-dense flat mask
    out_ref[...] = eff_t_ref[...] < obs_ref[...]


class LowdimMaskGenerator:
    """JAX/Pallas port of the PyTorch LowdimMaskGenerator (forward only)."""

    def __init__(self, action_dim, obs_dim, max_n_obs_steps=2,
                 fix_obs_steps=True, action_visible=False):
        self.action_dim = action_dim
        self.obs_dim = obs_dim
        self.max_n_obs_steps = max_n_obs_steps
        self.fix_obs_steps = fix_obs_steps
        self.action_visible = action_visible

    def _eff_threshold(self, T, D):
        """Per-lane threshold so that mask[b, lane] == (eff[lane] < obs[b])."""
        lane = np.arange(T * D, dtype=np.int64)
        t_idx = lane // D
        d_idx = lane % D
        is_action = d_idx < self.action_dim
        if self.action_visible:
            # t < max(obs - 1, 0)  <=>  t + 1 < obs   (obs >= 0, t >= 0)
            eff = np.where(is_action, t_idx + 1, t_idx)
        else:
            eff = np.where(is_action, np.int64(2 ** 30), t_idx)
        return jnp.asarray(eff.reshape(1, T * D), dtype=jnp.int32)

    def __call__(self, shape, device=None, seed=None, b_tile=None,
                 td_tile=None):
        del device  # placement handled by JAX
        B, T, D = shape
        assert D == self.action_dim + self.obs_dim
        TD = T * D

        if self.fix_obs_steps:
            # Mask depends only on Python constants: skip the kernel entirely,
            # build the (T, D) row with numpy (constant-folded by XLA) and
            # broadcast; the broadcast fuses into downstream consumers.
            obs = self.max_n_obs_steps
            t = np.arange(T)[:, None]
            is_action = (np.arange(D) < self.action_dim)[None, :]
            row = (t < obs) & ~is_action
            if self.action_visible:
                row = row | ((t < max(obs - 1, 0)) & is_action)
            row = jnp.asarray(row, dtype=jnp.bool_)
            return jnp.broadcast_to(row[None], (B, T, D))

        # TODO(synk): torch uses a fresh stateful Generator when seed is None
        # (non-deterministic); here an unseeded call falls back to PRNGKey(0),
        # and JAX/torch RNG streams differ, so obs_steps match in distribution
        # only.
        key = jax.random.PRNGKey(0 if seed is None else seed)
        obs_steps = jax.random.randint(
            key, (B,), minval=1, maxval=self.max_n_obs_steps + 1,
            dtype=jnp.int32)
        obs_col = obs_steps.reshape(B, 1)

        auto_b, auto_td = _choose_tiles(B, TD)
        if b_tile is None:
            b_tile = auto_b
        if td_tile is None:
            td_tile = auto_td
        n_b = pl.cdiv(B, b_tile)
        n_td = pl.cdiv(TD, td_tile)

        eff_t = self._eff_threshold(T, D)   # (1, TD) int32, constant-folded

        flat = pl.pallas_call(
            _mask_kernel,
            out_shape=jax.ShapeDtypeStruct((B, TD), jnp.bool_),
            grid=(n_b, n_td),
            in_specs=[
                pl.BlockSpec((1, td_tile), lambda i, j: (0, j)),      # eff_t
                pl.BlockSpec((b_tile, 1), lambda i, j: (i, 0)),       # obs
            ],
            out_specs=pl.BlockSpec((b_tile, td_tile), lambda i, j: (i, j)),
            compiler_params=pltpu.CompilerParams(
                dimension_semantics=("parallel", "parallel"),
                vmem_limit_bytes=_VMEM_LIMIT_BYTES),
        )(eff_t, obs_col)
        # Flat (B, T*D) -> (B, T, D): row-major contiguous, free reshape.
        return flat.reshape(B, T, D)


def _reference_mask(B, T, D, action_dim, obs_steps, action_visible):
    """Pure-JAX reference matching the given PyTorch semantics."""
    d_idx = jnp.arange(D)
    is_action_dim = (d_idx < action_dim)[None, None, :]
    is_obs_dim = ~is_action_dim
    steps = jnp.arange(T)[None, :, None]                      # (1, T, 1)
    obs_mask = (steps < obs_steps[:, None, None]) & is_obs_dim
    if action_visible:
        act_steps = jnp.maximum(obs_steps - 1, 0)
        act_mask = (steps < act_steps[:, None, None]) & is_action_dim
        return obs_mask | act_mask
    return obs_mask


if __name__ == "__main__":
    action_dim, obs_dim = 4, 6
    D = action_dim + obs_dim
    T = 8
    ok = True

    # 1) fix_obs_steps path: constant-folded jnp, no kernel dispatch.
    for action_visible in (False, True):
        gen = LowdimMaskGenerator(
            action_dim=action_dim, obs_dim=obs_dim, max_n_obs_steps=3,
            fix_obs_steps=True, action_visible=action_visible)
        B = 2
        mask = jax.block_until_ready(gen((B, T, D), seed=0))
        ref = _reference_mask(B, T, D, action_dim,
                              jnp.full((B,), 3, dtype=jnp.int32),
                              action_visible)
        ok = ok and (mask.dtype == jnp.bool_) and (mask.shape == (B, T, D)) \
            and bool(jnp.all(mask == ref))

    # 2) Random obs_steps path (Pallas kernel): single-block, ragged
    #    multi-block (B=40 with b_tile=32), and auto 2-way split (B=300).
    for action_visible in (False, True):
        gen = LowdimMaskGenerator(
            action_dim=action_dim, obs_dim=obs_dim, max_n_obs_steps=3,
            fix_obs_steps=False, action_visible=action_visible)
        for B, b_tile in ((40, None), (40, 32), (300, None)):
            mask = jax.block_until_ready(gen((B, T, D), seed=0, b_tile=b_tile))
            obs_steps = jax.random.randint(
                jax.random.PRNGKey(0), (B,), 1, 4, dtype=jnp.int32)
            ref = _reference_mask(B, T, D, action_dim, obs_steps,
                                  action_visible)
            ok = ok and (mask.dtype == jnp.bool_) \
                and (mask.shape == (B, T, D)) \
                and bool(jnp.all(mask == ref))

    if ok:
        print("KERNEL_OK")
    else:
        raise SystemExit("mismatch vs reference")
</pallas_src>

<mosaic_0001>
module attributes {stable_mosaic.version = 11 : i64} {
  func.func @_mask_kernel(%arg0: i32, %arg1: i32, %arg2: memref<1x80xi32, #tpu.memory_space<vmem>>, %arg3: memref<40x1xi32, #tpu.memory_space<vmem>>, %arg4: memref<40x80xi32, #tpu.memory_space<vmem>>) attributes {dimension_semantics = [#tpu.dimension_semantics<parallel>, #tpu.dimension_semantics<parallel>], iteration_bounds = array<i64: 1, 1>, scalar_prefetch = 0 : i64, scratch_operands = 0 : i64, tpu.core_type = #tpu.core_type<tc>, window_params = [{transform_indices = @transform_0, window_bounds = array<i64: 1, 80>}, {transform_indices = @transform_1, window_bounds = array<i64: 40, 1>}, {transform_indices = @transform_2, window_bounds = array<i64: 40, 80>}]} {
    %c0 = arith.constant 0 : index
    %c0_0 = arith.constant 0 : index
    %0 = vector.load %arg2[%c0, %c0_0] : memref<1x80xi32, #tpu.memory_space<vmem>>, vector<1x80xi32>
    %c0_1 = arith.constant 0 : index
    %c0_2 = arith.constant 0 : index
    %1 = vector.load %arg3[%c0_1, %c0_2] : memref<40x1xi32, #tpu.memory_space<vmem>>, vector<40x1xi32>
    %2 = vector.broadcast %0 : vector<1x80xi32> to vector<40x80xi32>
    %3 = vector.broadcast %1 : vector<40x1xi32> to vector<40x80xi32>
    %4 = arith.cmpi slt, %2, %3 : vector<40x80xi32>
    %c0_3 = arith.constant 0 : index
    %c0_4 = arith.constant 0 : index
    %5 = vector.load %arg4[%c0_3, %c0_4] : memref<40x80xi32, #tpu.memory_space<vmem>>, vector<40x80xi32>
    %6 = arith.extui %4 : vector<40x80xi1> to vector<40x80xi32>
    %cst = arith.constant dense<0> : vector<40x80xi32>
    %7 = arith.cmpi ne, %5, %cst : vector<40x80xi32>
    tpu.vector_store %arg4[%c0_3, %c0_4], %6 {strides = array<i32>} : memref<40x80xi32, #tpu.memory_space<vmem>>, vector<40x80xi32>,
    return
  }
  func.func @transform_0(%arg0: i32, %arg1: i32) -> (i32, i32) {
    %c0_i32 = arith.constant 0 : i32
    %c0_i32_0 = arith.constant 0 : i32
    return %c0_i32, %arg1 : i32, i32
  }
  func.func @transform_1(%arg0: i32, %arg1: i32) -> (i32, i32) {
    %c0_i32 = arith.constant 0 : i32
    %c0_i32_0 = arith.constant 0 : i32
    return %arg0, %c0_i32 : i32, i32
  }
  func.func @transform_2(%arg0: i32, %arg1: i32) -> (i32, i32) {
    %c0_i32 = arith.constant 0 : i32
    return %arg0, %arg1 : i32, i32
  }
}

</mosaic_0001>

<llo_original>
// kernel: tpu_custom_call.1
$region0: #{tpu_custom_call.1}
  #allocation0 [shape = 'u32[]', space=smem, size = 0x4, offset = 0x4, fixed_abs, tag = 'smem constant byte address 0x4 - core index']
  #allocation1 [shape = 'u32[144,128]{1,0:T(1,128)}', space=vmem, size = 0x12000, scoped, tag = 'internal scratch']
  %s0 = inlined_call_operand.vmem [shape: s32[1,80], index: 0, kind: input, shape index: {}]
  %s1 = inlined_call_operand.vmem [shape: s32[40,1], index: 1, kind: input, shape index: {}]
  %s2 = inlined_call_operand.vmem [shape: s32[40,80], index: 2, kind: output, shape index: {}]
  %s3 = sld [smem:[#allocation0]]
  $region18: #{tpu_custom_call.1} parent=0
    _
  %s5 = ssub.s32 1, %s3
  %s6 = scalar_select 0, %s5, %s3
  // Predicated region
  $region2: #{tpu_custom_call.1} parent=0 // pred_check
    _
  $region3: #{tpu_custom_call.1} parent=0 // pred_check_branch
    %8 = sbr.rel (0) target = $region5
  $region4: #{tpu_custom_call.1} parent=0 // pred_region
    _
  $region5: #{tpu_custom_call.1} parent=0 // pred_fallthru
    _
  // Predicated region
  $region6: #{tpu_custom_call.1} parent=0 // pred_check
    _
  $region7: #{tpu_custom_call.1} parent=0 // pred_check_branch
    %10 = sbr.rel (0) target = $region9
  $region8: #{tpu_custom_call.1} parent=0 // pred_region
    _
  $region9: #{tpu_custom_call.1} parent=0 // pred_fallthru
    _
  %v11 = vld [vmem:[%s0] sm:$0x1]
  %v12 = vld [vmem:[%s1] sm:$0xff]
  %v13 = vld [vmem:[%s1 + $0x8] sm:$0xff]
  %v14 = vld [vmem:[%s1 + $0x10] sm:$0xff]
  %v15 = vld [vmem:[%s1 + $0x18] sm:$0xff]
  %v16 = vld [vmem:[%s1 + $0x20] sm:$0xff]
  %v17 = vlaneseq
  %v18 = vshrl.u32 %v17, 7
  %v19 = vsub.s32 0, %v18
  %v20 = vrot.slane %v11, %v19
  %21 = vset.pattern.permute.xlu0 0
  %22 = vperm.xlu0 %21, %v12
  %v23 = vpop.permute.xlu0 %22
  %24 = vset.pattern.permute.xlu0 0
  %25 = vperm.xlu0 %24, %v13
  %v26 = vpop.permute.xlu0 %25
  %27 = vset.pattern.permute.xlu0 0
  %28 = vperm.xlu0 %27, %v14
  %v29 = vpop.permute.xlu0 %28
  %30 = vset.pattern.permute.xlu0 0
  %31 = vperm.xlu0 %30, %v15
  %v32 = vpop.permute.xlu0 %31
  %33 = vset.pattern.permute.xlu0 0
  %34 = vperm.xlu0 %33, %v16
  %v35 = vpop.permute.xlu0 %34
  %vm36 = vcmp.lt.s32.totalorder %v20, %v23
  %vm37 = vcmp.lt.s32.totalorder %v20, %v26
  %vm38 = vcmp.lt.s32.totalorder %v20, %v29
  %vm39 = vcmp.lt.s32.totalorder %v20, %v32
  %vm40 = vcmp.lt.s32.totalorder %v20, %v35
  %v41 = vsel %vm36, 1, 0
  %v42 = vsel %vm37, 1, 0
  %v43 = vsel %vm38, 1, 0
  %v44 = vsel %vm39, 1, 0
  %v45 = vsel %vm40, 1, 0
  %vm46 = vcmask 654336
  %47 = vst.msk [vmem:[%s2] sm:$0xff] %vm46, %v41
  %48 = vst.msk [vmem:[%s2 + $0x8] sm:$0xff] %vm46, %v42
  %49 = vst.msk [vmem:[%s2 + $0x10] sm:$0xff] %vm46, %v43
  %50 = vst.msk [vmem:[%s2 + $0x18] sm:$0xff] %vm46, %v44
  %51 = vst.msk [vmem:[%s2 + $0x20] sm:$0xff] %vm46, %v45
  // Predicated region
  $region10: #{tpu_custom_call.1} parent=0 // pred_check
    _
  $region11: #{tpu_custom_call.1} parent=0 // pred_check_branch
    %53 = sbr.rel (0) target = $region13
  $region12: #{tpu_custom_call.1} parent=0 // pred_region
    _
  $region13: #{tpu_custom_call.1} parent=0 // pred_fallthru
    _
  // Predicated region
  $region14: #{tpu_custom_call.1} parent=0 // pred_check
    _
  $region15: #{tpu_custom_call.1} parent=0 // pred_check_branch
    %55 = sbr.rel (0) target = $region17
  $region16: #{tpu_custom_call.1} parent=0 // pred_region
    _
  $region17: #{tpu_custom_call.1} parent=0 // pred_fallthru
    _

</llo_original>
